<compile_context>
chip_gen: v5e
topology: v5e:2x2
jax: 0.10.0
libtpu: 0.0.40
codegen_flags: <defaults>
</compile_context>

<pallas_src>
import math
from functools import partial

import jax
import jax.numpy as jnp
from jax.experimental import pallas as pl
from jax.experimental.pallas import tpu as pltpu

_VMEM_LIMIT_BYTES = 32 * 1024 * 1024   # explicit scoped-VMEM budget (safe v5e/v6e/v7x)


def _full_spec(a):
    """Whole-array resident block (weights): constant index_map, 1-D grid."""
    nd = a.ndim
    return pl.BlockSpec(a.shape, lambda i, _nd=nd: (0,) * _nd)


def _layer_spec(a):
    """Per-layer block of an L-stacked weight: indexed by the inner grid axis."""
    nd = a.ndim
    return pl.BlockSpec((1,) + a.shape[1:], lambda b, l, _nd=nd: (l,) + (0,) * (_nd - 1))


# --------------------- fused embedding-stage kernel ---------------------
# Single pallas_call for: state MLP (linear->ReLU->linear), action-combine
# linear, + agent-id + timestep positional add, + existence masking.  Grid is
# the batch axis (parallel); each step processes one (T*A, .) row slab so the
# intermediate activations never round-trip through HBM.

def _embed_fused_kernel(s_ref, acat_ref, ex_ref, pos_ref,
                        w1_ref, b1_ref, w2_ref, b2_ref, cw_ref, cb_ref,
                        se_ref, ae_ref, *, state_dim1):
    x = s_ref[0]                                         # (R, state_dim+1) f32
    # state-MLP layer 1: K = state_dim+1 (=5) is far too small for the MXU —
    # unrolled VPU broadcast multiply-adds instead of a dot.
    h1 = x[:, 0:1] * w1_ref[0:1, :] + b1_ref[...]
    for k in range(1, state_dim1):
        h1 = h1 + x[:, k:k + 1] * w1_ref[k:k + 1, :]
    h1 = jnp.maximum(h1, 0.0)
    # state-MLP layer 2 + action-combine linear: bf16 operands, f32 accumulate.
    se = jnp.dot(h1.astype(jnp.bfloat16), w2_ref[...],
                 preferred_element_type=jnp.float32) + b2_ref[...]
    ae = jnp.dot(acat_ref[0], cw_ref[...],
                 preferred_element_type=jnp.float32) + cb_ref[...]
    # fused (+ id + timestep) positional add and existence mask.
    se_ref[0] = ((se + ae + pos_ref[...]) * ex_ref[0]).astype(se_ref.dtype)
    ae_ref[0] = ae.astype(ae_ref.dtype)


def embed_fused_pallas(states, a_cat, existence, pos, p):
    b, r, sd1 = states.shape
    h = pos.shape[-1]
    weights = (pos, p['mlp_w1'], p['mlp_b1'], p['mlp_w2'], p['mlp_b2'],
               p['comb_w'], p['comb_b'])
    in_specs = ([pl.BlockSpec((1, r, sd1), lambda i: (i, 0, 0)),
                 pl.BlockSpec((1, r, 2 * h), lambda i: (i, 0, 0)),
                 pl.BlockSpec((1, r, 1), lambda i: (i, 0, 0))]
                + [_full_spec(a) for a in weights])
    out_specs = [pl.BlockSpec((1, r, h), lambda i: (i, 0, 0)),
                 pl.BlockSpec((1, r, h), lambda i: (i, 0, 0))]
    return pl.pallas_call(
        partial(_embed_fused_kernel, state_dim1=sd1),
        grid=(b,),
        in_specs=in_specs,
        out_specs=out_specs,
        out_shape=(jax.ShapeDtypeStruct((b, r, h), jnp.float32),
                   jax.ShapeDtypeStruct((b, r, h), jnp.float32)),
        compiler_params=pltpu.CompilerParams(
            dimension_semantics=("parallel",),
            vmem_limit_bytes=_VMEM_LIMIT_BYTES),
    )(states, a_cat, existence, *weights)


# --------------------- fused transformer encoder STACK ---------------------
# One pallas_call runs the whole nn.TransformerEncoder.  Grid = (batch, layer)
# with layer innermost/"arbitrary"; layer weights are stacked on a leading L
# axis and streamed one layer per grid step (auto double-buffered), while the
# running activation lives in a VMEM f32 scratch for the whole layer stack.

def _ln(v, g, b, eps=1e-5):
    m = jnp.mean(v, axis=-1, keepdims=True)
    var = jnp.mean(jnp.square(v - m), axis=-1, keepdims=True)
    return (v - m) * jax.lax.rsqrt(var + eps) * g + b


def _encoder_stack_kernel(x_ref, mask_ref,
                          wq_ref, wk_ref, wv_ref, bq_ref, bk_ref, bv_ref,
                          wo_ref, bo_ref, g1_ref, be1_ref,
                          w1_ref, b1_ref, w2_ref, b2_ref, g2_ref, be2_ref,
                          o_ref, h_scr, *, num_heads):
    """num_encoder_layers x PyTorch TransformerEncoderLayer (post-norm, ReLU,
    eval dropout=0).

    Heads are batched on a leading axis through head-split weights, so every
    projection / score / PV / output-projection is a single batched dot_general
    — no per-head lane slicing, no concatenate, no in-kernel transpose.
    1/sqrt(head_dim) is pre-folded into wq/bq at init time.  MXU operands are
    bf16 with f32 accumulation; softmax / LayerNorm / residuals stay f32.
    The activation is resident in `h_scr` across the layer grid axis.
    """
    l = pl.program_id(1)

    @pl.when(l == 0)
    def _():
        h_scr[...] = x_ref[0].astype(jnp.float32)

    x = h_scr[...]                                        # (S, H) f32
    s_len, h_dim = x.shape
    nh = num_heads

    xb = x.astype(jnp.bfloat16)
    x_h = jnp.broadcast_to(xb[None], (nh, s_len, h_dim))            # (nh, S, H)
    q = jnp.einsum('hsc,hcd->hsd', x_h, wq_ref[0],
                   preferred_element_type=jnp.float32) + bq_ref[0]
    k = jnp.einsum('hsc,hcd->hsd', x_h, wk_ref[0],
                   preferred_element_type=jnp.float32) + bk_ref[0]
    v = jnp.einsum('hsc,hcd->hsd', x_h, wv_ref[0],
                   preferred_element_type=jnp.float32) + bv_ref[0]

    s = jnp.einsum('hqd,hkd->hqk', q.astype(jnp.bfloat16), k.astype(jnp.bfloat16),
                   preferred_element_type=jnp.float32)              # (nh, S, S)
    s = s + mask_ref[0]                                             # (1, S) key mask
    s = s - jnp.max(s, axis=-1, keepdims=True)
    p = jnp.exp(s)
    p = p * pl.reciprocal(jnp.sum(p, axis=-1, keepdims=True), approx=True)

    o = jnp.einsum('hqk,hkd->hqd', p.astype(jnp.bfloat16), v.astype(jnp.bfloat16),
                   preferred_element_type=jnp.float32)              # (nh, S, hd)
    attn = jnp.sum(jnp.einsum('hqd,hdf->hqf', o.astype(jnp.bfloat16), wo_ref[0],
                              preferred_element_type=jnp.float32), axis=0)
    attn = attn + bo_ref[0]

    y = _ln(x + attn, g1_ref[0], be1_ref[0])
    ff = jnp.maximum(jnp.dot(y.astype(jnp.bfloat16), w1_ref[0],
                             preferred_element_type=jnp.float32) + b1_ref[0], 0.0)
    ff = jnp.dot(ff.astype(jnp.bfloat16), w2_ref[0],
                 preferred_element_type=jnp.float32) + b2_ref[0]
    z = _ln(y + ff, g2_ref[0], be2_ref[0])

    h_scr[...] = z

    @pl.when(l == pl.num_programs(1) - 1)
    def _():
        o_ref[0] = z.astype(o_ref.dtype)


def encoder_stack_pallas(x, mask_add, ep, num_heads, num_layers):
    b, s, h = x.shape
    weights = (ep['wq'], ep['wk'], ep['wv'], ep['bq'], ep['bk'], ep['bv'],
               ep['wo'], ep['bo'], ep['ln1_g'], ep['ln1_b'],
               ep['w1'], ep['b1'], ep['w2'], ep['b2'], ep['ln2_g'], ep['ln2_b'])
    in_specs = ([pl.BlockSpec((1, s, h), lambda bi, li: (bi, 0, 0)),
                 pl.BlockSpec((1, 1, s), lambda bi, li: (bi, 0, 0))]
                + [_layer_spec(a) for a in weights])
    # TODO(synk): for long sequences this should be flash-tiled over S
    # (grid=(b, L, S//tq) with online softmax); whole-S blocks are fine here.
    return pl.pallas_call(
        partial(_encoder_stack_kernel, num_heads=num_heads),
        grid=(b, num_layers),
        in_specs=in_specs,
        out_specs=pl.BlockSpec((1, s, h), lambda bi, li: (bi, 0, 0)),
        out_shape=jax.ShapeDtypeStruct((b, s, h), jnp.float32),
        scratch_shapes=[pltpu.VMEM((s, h), jnp.float32)],
        compiler_params=pltpu.CompilerParams(
            dimension_semantics=("parallel", "arbitrary"),
            vmem_limit_bytes=_VMEM_LIMIT_BYTES),
    )(x, mask_add, *weights)


# ------------------------- glue (plain JAX) -------------------------

def sinusoidal_pe(max_len, dim):
    pos = jnp.arange(max_len, dtype=jnp.float32)[:, None]
    div = jnp.exp(jnp.arange(0, dim, 2, dtype=jnp.float32) * (-math.log(10000.0) / dim))
    pe = jnp.zeros((max_len, dim), jnp.float32)
    pe = pe.at[:, 0::2].set(jnp.sin(pos * div))
    pe = pe.at[:, 1::2].set(jnp.cos(pos * div))
    return pe


# TODO(synk): exact discretize_actions() source unavailable; using polar
# (direction, norm) bucketing: dir tokens in [0, dir_disc), norm tokens in
# [dir_disc, dir_disc + norm_disc); vocabulary_size = dir_disc + norm_disc.
def discretize_actions(actions, dir_disc, norm_disc):
    dx, dy = actions[..., 0], actions[..., 1]
    angle = jnp.arctan2(dy, dx)
    dir_tok = jnp.clip(jnp.floor((angle + jnp.pi) / (2.0 * jnp.pi) * dir_disc),
                       0, dir_disc - 1).astype(jnp.int32)
    norm = jnp.sqrt(dx * dx + dy * dy)
    norm_tok = dir_disc + jnp.clip(jnp.floor(norm * norm_disc),
                                   0, norm_disc - 1).astype(jnp.int32)
    return jnp.stack([dir_tok, norm_tok], axis=-1)


def init_params(key, cfg):
    h = cfg['hidden_dim']
    f = cfg['dim_feedforward']
    nh = cfg['num_heads']
    L = cfg['num_encoder_layers']
    hd = h // nh
    q_scale = 1.0 / math.sqrt(hd)          # 1/sqrt(head_dim), folded into wq once
    std = 0.02
    bf = jnp.bfloat16
    ks = jax.random.split(key, 12)

    def rnd(k, shape):
        return std * jax.random.normal(k, shape, jnp.float32)

    p = {
        'embed_action': rnd(ks[0], (cfg['vocabulary_size'], h)),
        'embed_agent_id': rnd(ks[1], (cfg['max_num_agents'], h)),
        # TODO(synk): MLPLayer internals unavailable; using Linear->ReLU->Linear.
        'mlp_w1': rnd(ks[2], (cfg['state_dim'] + 1, h)),          # f32 (VPU path)
        'mlp_b1': jnp.zeros((1, h), jnp.float32),
        'mlp_w2': rnd(ks[3], (h, h)).astype(bf),
        'mlp_b2': jnp.zeros((1, h), jnp.float32),
        'comb_w': rnd(ks[4], (2 * h, h)).astype(bf),
        'comb_b': jnp.zeros((1, h), jnp.float32),
    }

    # Stacked (leading L axis) transformer weights.
    # Weight layout vs PyTorch (per layer l): wq/wk/wv == in_proj_weight[:h].T /
    # [h:2h].T / [2h:3h].T head-split to (nh, H, hd); wo == out_proj.weight.T
    # reshaped to (nh, hd, H).  Keep exactly this mapping when importing weights.
    def split_out(w):   # (L, H, H) -> (L, nh, H, hd): split the output dim per head
        return jnp.transpose(w.reshape(L, h, nh, hd), (0, 2, 1, 3))

    p['enc'] = {
        'wq': (q_scale * split_out(rnd(ks[5], (L, h, h)))).astype(bf),
        'wk': split_out(rnd(ks[6], (L, h, h))).astype(bf),
        'wv': split_out(rnd(ks[7], (L, h, h))).astype(bf),
        'bq': jnp.zeros((L, nh, 1, hd), jnp.float32),
        'bk': jnp.zeros((L, nh, 1, hd), jnp.float32),
        'bv': jnp.zeros((L, nh, 1, hd), jnp.float32),
        'wo': rnd(ks[8], (L, h, h)).reshape(L, nh, hd, h).astype(bf),
        'bo': jnp.zeros((L, 1, h), jnp.float32),
        'ln1_g': jnp.ones((L, 1, h), jnp.float32),
        'ln1_b': jnp.zeros((L, 1, h), jnp.float32),
        'w1': rnd(ks[9], (L, h, f)).astype(bf),
        'b1': jnp.zeros((L, 1, f), jnp.float32),
        'w2': rnd(ks[10], (L, f, h)).astype(bf),
        'b2': jnp.zeros((L, 1, h), jnp.float32),
        'ln2_g': jnp.ones((L, 1, h), jnp.float32),
        'ln2_b': jnp.zeros((L, 1, h), jnp.float32),
    }
    return p


def encoder_forward(params, cfg, data_dict):
    h = cfg['hidden_dim']
    num_agents = cfg['max_num_agents']
    actions = data_dict['actions'][:, :, :num_agents]
    bboxes = data_dict['bboxes'][:, :, :num_agents]
    type_ids = data_dict['type_ids'][:, :, :num_agents]
    existence = data_dict['existence'][:, :, :num_agents].astype(jnp.float32)
    batch_size, num_timesteps, num_agents, _ = bboxes.shape
    rows = num_timesteps * num_agents

    if cfg['last_frame_traj']:
        x1, y1, x2, y2 = (bboxes[:, -1, :, 0], bboxes[:, -1, :, 1],
                          bboxes[:, -1, :, 2], bboxes[:, -1, :, 3])
        cx = (jnp.maximum(x1, x2) + jnp.minimum(x1, x2)) / 2.0
        cy = (jnp.maximum(y1, y2) + jnp.minimum(y1, y2)) / 2.0
        last = jnp.stack([cx, cy, jnp.zeros_like(cx), jnp.zeros_like(cy)], axis=-1)
        bboxes = bboxes.at[:, -1].set(last)

    states = jnp.concatenate([bboxes, type_ids], axis=-1)             # (B,T,A,SD+1)
    states_flat = states.reshape(batch_size, rows, cfg['state_dim'] + 1).astype(jnp.float32)

    # --- action tokenization + embedding-table gathers (JAX glue) ---
    actions_tokenized = discretize_actions(actions, cfg['dir_disc'], cfg['norm_disc'])
    a1 = params['embed_action'][actions_tokenized[..., 0]]
    a2 = params['embed_action'][actions_tokenized[..., 1]]
    a_cat = jnp.concatenate([a1, a2], axis=-1).reshape(batch_size, rows, 2 * h)
    a_cat = a_cat.astype(jnp.bfloat16)                                 # bf16 MXU operand

    # --- agent-id + sinusoidal timestep embeddings -> one (T*A, H) resident slab ---
    id_embeddings = params['embed_agent_id'][jnp.arange(num_agents)][None, None]   # (1,1,A,H)
    pe = sinusoidal_pe(cfg['num_timesteps'], h)
    timestep_embeddings = pe[jnp.arange(num_timesteps)][None, :, None, :]           # (1,T,1,H)
    pos = (id_embeddings + timestep_embeddings).reshape(rows, h)

    if cfg['only_keep_initial_agents']:
        initial_existence = existence[:, 0]
        if cfg['always_predict_initial_agents']:
            existence = jnp.broadcast_to(initial_existence[:, None],
                                         (batch_size, num_timesteps, num_agents, 1))
        else:
            existence = (existence.astype(bool)
                         & initial_existence[:, None].astype(bool)).astype(jnp.float32)

    # --- fused embedding stage (state MLP + action combine + positional + mask) ---
    se_flat, ae_flat = embed_fused_pallas(states_flat, a_cat,
                                          existence.reshape(batch_size, rows, 1),
                                          pos, params)
    state_embeddings = se_flat.reshape(batch_size, num_timesteps, num_agents, h)
    action_embeddings = ae_flat.reshape(batch_size, num_timesteps, num_agents, h)

    num_initial_frames = cfg['initial_frames_condition_num'] or 1
    initial_state_embeddings = state_embeddings[:, :num_initial_frames]

    valid_batches = (existence.sum(axis=2)[..., 0] != 0).all(axis=1)          # (B,)
    # data-dependent batch filtering is host-side glue (eager, not jitted)
    idx = jnp.nonzero(valid_batches)[0]
    action_embeddings = action_embeddings[idx]
    state_embeddings = state_embeddings[idx]
    initial_state_embeddings = initial_state_embeddings[idx]
    existence = existence[idx]
    bboxes = bboxes[idx]
    actions_tokenized = actions_tokenized[idx]
    batch_size = int(bboxes.shape[0])
    if batch_size == 0:
        return None

    if not cfg['condition_last_frame']:
        conditioning_existence = existence[:, :num_initial_frames]
        input_state_embeddings = initial_state_embeddings
    else:
        conditioning_existence = jnp.concatenate(
            [existence[:, :num_initial_frames], existence[:, -1:]], axis=1)
        input_state_embeddings = jnp.concatenate(
            [initial_state_embeddings, state_embeddings[:, -1:]], axis=1)

    conditioning_existence = conditioning_existence.reshape(batch_size, -1, 1)
    src_key_padding_mask = conditioning_existence[..., 0] == 0
    input_state_embeddings = input_state_embeddings.reshape(batch_size, -1, h)

    # cfg.map_embedding == False -> no image encoder path
    input_embeddings = input_state_embeddings
    seq_len = input_embeddings.shape[1]
    mask_add = jnp.where(src_key_padding_mask, -1e30, 0.0).astype(jnp.float32)
    mask_add = mask_add.reshape(batch_size, 1, seq_len)

    # --- transformer encoder stack: single fused Pallas kernel over all layers ---
    x = encoder_stack_pallas(input_embeddings, mask_add, params['enc'],
                             cfg['num_heads'], cfg['num_encoder_layers'])

    encoder_embeddings = x.at[:, :conditioning_existence.shape[1]].multiply(
        conditioning_existence)

    existence_flat = existence.reshape(batch_size, num_timesteps * num_agents)
    tgt_key_padding_mask = existence_flat == 0

    return {
        'encoder_embeddings': encoder_embeddings,
        'action_embeddings': action_embeddings,
        'state_embeddings': state_embeddings,
        'actions_tokenized': actions_tokenized,
        'src_key_padding_mask': src_key_padding_mask,
        'tgt_key_padding_mask': tgt_key_padding_mask,
        'existence_mask': existence,
        'id_embeddings': id_embeddings,
        'timestep_embeddings': timestep_embeddings,
        'valid_batch_mask': valid_batches,
    }


if __name__ == "__main__":
    cfg = dict(hidden_dim=32, vocabulary_size=16, state_dim=4, num_timesteps=8,
               max_num_agents=4, map_embedding=False, num_heads=4,
               dim_feedforward=64, num_encoder_layers=2, dir_disc=8, norm_disc=8,
               last_frame_traj=False, only_keep_initial_agents=False,
               always_predict_initial_agents=False,
               initial_frames_condition_num=1, condition_last_frame=False)

    key = jax.random.PRNGKey(0)
    kp, ka, kb, kt = jax.random.split(key, 4)
    params = init_params(kp, cfg)

    B, T, A = 2, cfg['num_timesteps'], cfg['max_num_agents']
    data = {
        'actions': jax.random.normal(ka, (B, T, A, 2), jnp.float32),
        'bboxes': jax.random.uniform(kb, (B, T, A, 4), jnp.float32),
        'type_ids': jax.random.randint(kt, (B, T, A, 1), 0, 3).astype(jnp.float32),
        'existence': jnp.ones((B, T, A, 1), jnp.float32),
    }

    out = encoder_forward(params, cfg, data)
    jax.block_until_ready(out['encoder_embeddings'])
    assert out['encoder_embeddings'].shape == (
        B, cfg['initial_frames_condition_num'] * A, cfg['hidden_dim'])
    assert not bool(jnp.isnan(out['encoder_embeddings']).any())
    assert out['action_embeddings'].shape == (B, T, A, cfg['hidden_dim'])
    print("KERNEL_OK")
</pallas_src>

<mosaic_0001>
module attributes {stable_mosaic.version = 11 : i64} {
  func.func @_embed_fused_kernel(%arg0: i32, %arg1: memref<1x32x5xf32, #tpu.memory_space<vmem>>, %arg2: memref<1x32x64xbf16, #tpu.memory_space<vmem>>, %arg3: memref<1x32x1xf32, #tpu.memory_space<vmem>>, %arg4: memref<32x32xf32, #tpu.memory_space<vmem>>, %arg5: memref<5x32xf32, #tpu.memory_space<vmem>>, %arg6: memref<1x32xf32, #tpu.memory_space<vmem>>, %arg7: memref<32x32xbf16, #tpu.memory_space<vmem>>, %arg8: memref<1x32xf32, #tpu.memory_space<vmem>>, %arg9: memref<64x32xbf16, #tpu.memory_space<vmem>>, %arg10: memref<1x32xf32, #tpu.memory_space<vmem>>, %arg11: memref<1x32x32xf32, #tpu.memory_space<vmem>>, %arg12: memref<1x32x32xf32, #tpu.memory_space<vmem>>) attributes {dimension_semantics = [#tpu.dimension_semantics<parallel>], iteration_bounds = array<i64: 2>, scalar_prefetch = 0 : i64, scratch_operands = 0 : i64, tpu.core_type = #tpu.core_type<tc>, window_params = [{transform_indices = @transform_0, window_bounds = array<i64: 1, 32, 5>}, {transform_indices = @transform_1, window_bounds = array<i64: 1, 32, 64>}, {transform_indices = @transform_2, window_bounds = array<i64: 1, 32, 1>}, {pipeline_mode = #tpu.pipeline_mode<synchronous>, transform_indices = @transform_3, window_bounds = array<i64: 32, 32>}, {pipeline_mode = #tpu.pipeline_mode<synchronous>, transform_indices = @transform_4, window_bounds = array<i64: 5, 32>}, {pipeline_mode = #tpu.pipeline_mode<synchronous>, transform_indices = @transform_5, window_bounds = array<i64: 1, 32>}, {pipeline_mode = #tpu.pipeline_mode<synchronous>, transform_indices = @transform_6, window_bounds = array<i64: 32, 32>}, {pipeline_mode = #tpu.pipeline_mode<synchronous>, transform_indices = @transform_7, window_bounds = array<i64: 1, 32>}, {pipeline_mode = #tpu.pipeline_mode<synchronous>, transform_indices = @transform_8, window_bounds = array<i64: 64, 32>}, {pipeline_mode = #tpu.pipeline_mode<synchronous>, transform_indices = @transform_9, window_bounds = array<i64: 1, 32>}, {transform_indices = @transform_10, window_bounds = array<i64: 1, 32, 32>}, {transform_indices = @transform_11, window_bounds = array<i64: 1, 32, 32>}]} {
    %c0 = arith.constant 0 : index
    %c0_0 = arith.constant 0 : index
    %c0_1 = arith.constant 0 : index
    %0 = vector.load %arg1[%c0, %c0_0, %c0_1] : memref<1x32x5xf32, #tpu.memory_space<vmem>>, vector<1x32x5xf32>
    %1 = vector.shape_cast %0 : vector<1x32x5xf32> to vector<32x5xf32>
    %2 = vector.extract_strided_slice %1 {offsets = [0, 0], sizes = [32, 1], strides = [1, 1]} : vector<32x5xf32> to vector<32x1xf32>
    %c0_2 = arith.constant 0 : index
    %c0_3 = arith.constant 0 : index
    %3 = vector.load %arg5[%c0_2, %c0_3] : memref<5x32xf32, #tpu.memory_space<vmem>>, vector<1x32xf32>
    %4 = vector.broadcast %2 : vector<32x1xf32> to vector<32x32xf32>
    %5 = vector.broadcast %3 : vector<1x32xf32> to vector<32x32xf32>
    %6 = arith.mulf %4, %5 : vector<32x32xf32>
    %c0_4 = arith.constant 0 : index
    %c0_5 = arith.constant 0 : index
    %7 = vector.load %arg6[%c0_4, %c0_5] : memref<1x32xf32, #tpu.memory_space<vmem>>, vector<1x32xf32>
    %8 = vector.broadcast %7 : vector<1x32xf32> to vector<32x32xf32>
    %9 = arith.addf %6, %8 : vector<32x32xf32>
    %10 = vector.extract_strided_slice %1 {offsets = [0, 1], sizes = [32, 1], strides = [1, 1]} : vector<32x5xf32> to vector<32x1xf32>
    %c1 = arith.constant 1 : index
    %c0_6 = arith.constant 0 : index
    %11 = vector.load %arg5[%c1, %c0_6] : memref<5x32xf32, #tpu.memory_space<vmem>>, vector<1x32xf32>
    %12 = vector.broadcast %10 : vector<32x1xf32> to vector<32x32xf32>
    %13 = vector.broadcast %11 : vector<1x32xf32> to vector<32x32xf32>
    %14 = arith.mulf %12, %13 : vector<32x32xf32>
    %15 = arith.addf %9, %14 : vector<32x32xf32>
    %16 = vector.extract_strided_slice %1 {offsets = [0, 2], sizes = [32, 1], strides = [1, 1]} : vector<32x5xf32> to vector<32x1xf32>
    %c2 = arith.constant 2 : index
    %c0_7 = arith.constant 0 : index
    %17 = vector.load %arg5[%c2, %c0_7] : memref<5x32xf32, #tpu.memory_space<vmem>>, vector<1x32xf32>
    %18 = vector.broadcast %16 : vector<32x1xf32> to vector<32x32xf32>
    %19 = vector.broadcast %17 : vector<1x32xf32> to vector<32x32xf32>
    %20 = arith.mulf %18, %19 : vector<32x32xf32>
    %21 = arith.addf %15, %20 : vector<32x32xf32>
    %22 = vector.extract_strided_slice %1 {offsets = [0, 3], sizes = [32, 1], strides = [1, 1]} : vector<32x5xf32> to vector<32x1xf32>
    %c3 = arith.constant 3 : index
    %c0_8 = arith.constant 0 : index
    %23 = vector.load %arg5[%c3, %c0_8] : memref<5x32xf32, #tpu.memory_space<vmem>>, vector<1x32xf32>
    %24 = vector.broadcast %22 : vector<32x1xf32> to vector<32x32xf32>
    %25 = vector.broadcast %23 : vector<1x32xf32> to vector<32x32xf32>
    %26 = arith.mulf %24, %25 : vector<32x32xf32>
    %27 = arith.addf %21, %26 : vector<32x32xf32>
    %28 = vector.extract_strided_slice %1 {offsets = [0, 4], sizes = [32, 1], strides = [1, 1]} : vector<32x5xf32> to vector<32x1xf32>
    %c4 = arith.constant 4 : index
    %c0_9 = arith.constant 0 : index
    %29 = vector.load %arg5[%c4, %c0_9] : memref<5x32xf32, #tpu.memory_space<vmem>>, vector<1x32xf32>
    %30 = vector.broadcast %28 : vector<32x1xf32> to vector<32x32xf32>
    %31 = vector.broadcast %29 : vector<1x32xf32> to vector<32x32xf32>
    %32 = arith.mulf %30, %31 : vector<32x32xf32>
    %33 = arith.addf %27, %32 : vector<32x32xf32>
    %cst = arith.constant 0.000000e+00 : f32
    %34 = vector.broadcast %cst : f32 to vector<32x32xf32>
    %35 = arith.maximumf %33, %34 : vector<32x32xf32>
    %36 = arith.truncf %35 : vector<32x32xf32> to vector<32x32xbf16>
    %c0_10 = arith.constant 0 : index
    %c0_11 = arith.constant 0 : index
    %37 = vector.load %arg7[%c0_10, %c0_11] : memref<32x32xbf16, #tpu.memory_space<vmem>>, vector<32x32xbf16>
    %cst_12 = arith.constant dense<0.000000e+00> : vector<32x32xf32>
    %38 = tpu.matmul %36, %37, %cst_12 {dimension_numbers = #tpu.dot_dimension_numbers<[1], [0], [0], [1], [0, 0, 1, 1], [], []>} : vector<32x32xbf16>, vector<32x32xbf16>, vector<32x32xf32> -> vector<32x32xf32>
    %c0_13 = arith.constant 0 : index
    %c0_14 = arith.constant 0 : index
    %39 = vector.load %arg8[%c0_13, %c0_14] : memref<1x32xf32, #tpu.memory_space<vmem>>, vector<1x32xf32>
    %40 = vector.broadcast %39 : vector<1x32xf32> to vector<32x32xf32>
    %41 = arith.addf %38, %40 : vector<32x32xf32>
    %c0_15 = arith.constant 0 : index
    %c0_16 = arith.constant 0 : index
    %c0_17 = arith.constant 0 : index
    %42 = vector.load %arg2[%c0_15, %c0_16, %c0_17] : memref<1x32x64xbf16, #tpu.memory_space<vmem>>, vector<1x32x64xbf16>
    %43 = vector.shape_cast %42 : vector<1x32x64xbf16> to vector<32x64xbf16>
    %c0_18 = arith.constant 0 : index
    %c0_19 = arith.constant 0 : index
    %44 = vector.load %arg9[%c0_18, %c0_19] : memref<64x32xbf16, #tpu.memory_space<vmem>>, vector<64x32xbf16>
    %cst_20 = arith.constant dense<0.000000e+00> : vector<32x32xf32>
    %45 = tpu.matmul %43, %44, %cst_20 {dimension_numbers = #tpu.dot_dimension_numbers<[1], [0], [0], [1], [0, 0, 1, 1], [], []>} : vector<32x64xbf16>, vector<64x32xbf16>, vector<32x32xf32> -> vector<32x32xf32>
    %c0_21 = arith.constant 0 : index
    %c0_22 = arith.constant 0 : index
    %46 = vector.load %arg10[%c0_21, %c0_22] : memref<1x32xf32, #tpu.memory_space<vmem>>, vector<1x32xf32>
    %47 = vector.broadcast %46 : vector<1x32xf32> to vector<32x32xf32>
    %48 = arith.addf %45, %47 : vector<32x32xf32>
    %49 = arith.addf %41, %48 : vector<32x32xf32>
    %c0_23 = arith.constant 0 : index
    %c0_24 = arith.constant 0 : index
    %50 = vector.load %arg4[%c0_23, %c0_24] : memref<32x32xf32, #tpu.memory_space<vmem>>, vector<32x32xf32>
    %51 = arith.addf %49, %50 : vector<32x32xf32>
    %c0_25 = arith.constant 0 : index
    %c0_26 = arith.constant 0 : index
    %c0_27 = arith.constant 0 : index
    %52 = vector.load %arg3[%c0_25, %c0_26, %c0_27] : memref<1x32x1xf32, #tpu.memory_space<vmem>>, vector<1x32x1xf32>
    %53 = vector.shape_cast %52 : vector<1x32x1xf32> to vector<32x1xf32>
    %54 = vector.broadcast %53 : vector<32x1xf32> to vector<32x32xf32>
    %55 = arith.mulf %51, %54 : vector<32x32xf32>
    %c0_28 = arith.constant 0 : index
    %c0_29 = arith.constant 0 : index
    %c0_30 = arith.constant 0 : index
    %56 = vector.load %arg11[%c0_28, %c0_29, %c0_30] : memref<1x32x32xf32, #tpu.memory_space<vmem>>, vector<1x32x32xf32>
    %57 = vector.shape_cast %56 : vector<1x32x32xf32> to vector<32x32xf32>
    %58 = vector.shape_cast %55 : vector<32x32xf32> to vector<1x32x32xf32>
    tpu.vector_store %arg11[%c0_28, %c0_29, %c0_30], %58 {strides = array<i32>} : memref<1x32x32xf32, #tpu.memory_space<vmem>>, vector<1x32x32xf32>,
    %c0_31 = arith.constant 0 : index
    %c0_32 = arith.constant 0 : index
    %c0_33 = arith.constant 0 : index
    %59 = vector.load %arg12[%c0_31, %c0_32, %c0_33] : memref<1x32x32xf32, #tpu.memory_space<vmem>>, vector<1x32x32xf32>
    %60 = vector.shape_cast %59 : vector<1x32x32xf32> to vector<32x32xf32>
    %61 = vector.shape_cast %48 : vector<32x32xf32> to vector<1x32x32xf32>
    tpu.vector_store %arg12[%c0_31, %c0_32, %c0_33], %61 {strides = array<i32>} : memref<1x32x32xf32, #tpu.memory_space<vmem>>, vector<1x32x32xf32>,
    return
  }
  func.func @transform_0(%arg0: i32) -> (i32, i32, i32) {
    %c0_i32 = arith.constant 0 : i32
    %c0_i32_0 = arith.constant 0 : i32
    %c0_i32_1 = arith.constant 0 : i32
    return %arg0, %c0_i32, %c0_i32_0 : i32, i32, i32
  }
  func.func @transform_1(%arg0: i32) -> (i32, i32, i32) {
    %c0_i32 = arith.constant 0 : i32
    %c0_i32_0 = arith.constant 0 : i32
    %c0_i32_1 = arith.constant 0 : i32
    return %arg0, %c0_i32, %c0_i32_0 : i32, i32, i32
  }
  func.func @transform_2(%arg0: i32) -> (i32, i32, i32) {
    %c0_i32 = arith.constant 0 : i32
    %c0_i32_0 = arith.constant 0 : i32
    %c0_i32_1 = arith.constant 0 : i32
    return %arg0, %c0_i32, %c0_i32_0 : i32, i32, i32
  }
  func.func @transform_3(%arg0: i32) -> (i32, i32) {
    %c0_i32 = arith.constant 0 : i32
    %c0_i32_0 = arith.constant 0 : i32
    %c0_i32_1 = arith.constant 0 : i32
    return %c0_i32, %c0_i32_0 : i32, i32
  }
  func.func @transform_4(%arg0: i32) -> (i32, i32) {
    %c0_i32 = arith.constant 0 : i32
    %c0_i32_0 = arith.constant 0 : i32
    %c0_i32_1 = arith.constant 0 : i32
    return %c0_i32, %c0_i32_0 : i32, i32
  }
  func.func @transform_5(%arg0: i32) -> (i32, i32) {
    %c0_i32 = arith.constant 0 : i32
    %c0_i32_0 = arith.constant 0 : i32
    %c0_i32_1 = arith.constant 0 : i32
    return %c0_i32, %c0_i32_0 : i32, i32
  }
  func.func @transform_6(%arg0: i32) -> (i32, i32) {
    %c0_i32 = arith.constant 0 : i32
    %c0_i32_0 = arith.constant 0 : i32
    %c0_i32_1 = arith.constant 0 : i32
    return %c0_i32, %c0_i32_0 : i32, i32
  }
  func.func @transform_7(%arg0: i32) -> (i32, i32) {
    %c0_i32 = arith.constant 0 : i32
    %c0_i32_0 = arith.constant 0 : i32
    %c0_i32_1 = arith.constant 0 : i32
    return %c0_i32, %c0_i32_0 : i32, i32
  }
  func.func @transform_8(%arg0: i32) -> (i32, i32) {
    %c0_i32 = arith.constant 0 : i32
    %c0_i32_0 = arith.constant 0 : i32
    %c0_i32_1 = arith.constant 0 : i32
    return %c0_i32, %c0_i32_0 : i32, i32
  }
  func.func @transform_9(%arg0: i32) -> (i32, i32) {
    %c0_i32 = arith.constant 0 : i32
    %c0_i32_0 = arith.constant 0 : i32
    %c0_i32_1 = arith.constant 0 : i32
    return %c0_i32, %c0_i32_0 : i32, i32
  }
  func.func @transform_10(%arg0: i32) -> (i32, i32, i32) {
    %c0_i32 = arith.constant 0 : i32
    %c0_i32_0 = arith.constant 0 : i32
    %c0_i32_1 = arith.constant 0 : i32
    return %arg0, %c0_i32, %c0_i32_0 : i32, i32, i32
  }
  func.func @transform_11(%arg0: i32) -> (i32, i32, i32) {
    %c0_i32 = arith.constant 0 : i32
    %c0_i32_0 = arith.constant 0 : i32
    %c0_i32_1 = arith.constant 0 : i32
    return %arg0, %c0_i32, %c0_i32_0 : i32, i32, i32
  }
}

</mosaic_0001>

<llo_original>
// kernel: tpu_custom_call.1
$region0: #{tpu_custom_call.1}
  #allocation0 [shape = 'u32[]', space=smem, size = 0x4, offset = 0x4, fixed_abs, tag = 'smem constant byte address 0x4 - core index']
  #allocation1 [shape = 'u32[72,128]{1,0:T(1,128)}', space=vmem, size = 0x9000, scoped, tag = 'internal scratch']
  %s0 = inlined_call_operand.vmem [shape: f32[2,32,5], index: 0, kind: input, shape index: {}]
  %s1 = inlined_call_operand.vmem [shape: bf16[2,32,64], index: 1, kind: input, shape index: {}]
  %s2 = inlined_call_operand.vmem [shape: f32[2,32,1], index: 2, kind: input, shape index: {}]
  %s3 = inlined_call_operand.vmem [shape: f32[32,32], index: 3, kind: input, shape index: {}]
  %s4 = inlined_call_operand.vmem [shape: f32[5,32], index: 4, kind: input, shape index: {}]
  %s5 = inlined_call_operand.vmem [shape: f32[1,32], index: 5, kind: input, shape index: {}]
  %s6 = inlined_call_operand.vmem [shape: bf16[32,32], index: 6, kind: input, shape index: {}]
  %s7 = inlined_call_operand.vmem [shape: f32[1,32], index: 7, kind: input, shape index: {}]
  %s8 = inlined_call_operand.vmem [shape: bf16[64,32], index: 8, kind: input, shape index: {}]
  %s9 = inlined_call_operand.vmem [shape: f32[1,32], index: 9, kind: input, shape index: {}]
  %s10 = inlined_call_operand.hbm [shape: f32[2,32,32], index: 10, kind: output, shape index: {0}]
  %s11 = inlined_call_operand.hbm [shape: f32[2,32,32], index: 11, kind: output, shape index: {1}]
  %12 = xla_tuple %s10, %s11
  %s13 = sld [smem:[#allocation0]]
  $region81: #{tpu_custom_call.1} parent=0
    _
  %s15 = ssub.s32 1, %s13
  %s16 = scalar_select 0, %s15, %s13
  $region1: #{tpu_custom_call.1} parent=0
    #allocation2 [shape = 'u8[32768]{0}', space=vmem, size = 0x8000, scoped, tag = 'output window, operand 0']
    #allocation3 [shape = 's32[2]{0}', space=sflag, size = 0x8, scoped, tag = 'scoped memory for tpu_custom_call.1']
    #allocation4 [shape = 'u8[32768]{0}', space=vmem, size = 0x8000, scoped, tag = 'output window, operand 1']
    #allocation5 [shape = 's32[2]{0}', space=sflag, size = 0x8, scoped, tag = 'scoped memory for tpu_custom_call.1']
    %17 = vsyncpa [#allocation3], 0
    %s18 = scalar_lea.sflag [#allocation3], 1
    %19 = vsyncpa %s18, 0
    %20 = vsyncpa [#allocation5], 0
    %s21 = scalar_lea.sflag [#allocation5], 1
    %22 = vsyncpa %s21, 0
    loop: start=0, step=1, limit=4
    $region2: #{tpu_custom_call.1} parent=1 // loop_pre_header
      _
    $region3: #{tpu_custom_call.1} parent=1 // loop_header
      %s24 = sphi 0, %s28
      %p25 = scmp.ge.s32.totalorder %s24, 4
      %s34 = sphi 0, %s36
      %s37 = sphi 0, %s34
      %s38 = sphi 0, %s37
      %s54 = sphi 0, %s38
      %s60 = sphi 0, %s62
      %s63 = sphi 0, %s60
      %s64 = sphi 0, %s63
      %s80 = sphi 0, %s64
      %s86 = sphi 0, %s88
      %s89 = sphi 0, %s86
      %s90 = sphi 0, %s89
      %s106 = sphi 0, %s90
      %s110 = sphi 0, %s110
      %s112 = sphi 0, %s110
      %s113 = sphi 0, %s112
      %s127 = sphi 0, %s113
      %s131 = sphi 0, %s131
      %s133 = sphi 0, %s131
      %s134 = sphi 0, %s133
      %s148 = sphi 0, %s134
      %s152 = sphi 0, %s152
      %s154 = sphi 0, %s152
      %s155 = sphi 0, %s154
      %s169 = sphi 0, %s155
      %s173 = sphi 0, %s173
      %s175 = sphi 0, %s173
      %s176 = sphi 0, %s175
      %s190 = sphi 0, %s176
      %s194 = sphi 0, %s194
      %s196 = sphi 0, %s194
      %s197 = sphi 0, %s196
      %s211 = sphi 0, %s197
      %s215 = sphi 0, %s215
      %s217 = sphi 0, %s215
      %s218 = sphi 0, %s217
      %s232 = sphi 0, %s218
      %s236 = sphi 0, %s236
      %s238 = sphi 0, %s236
      %s239 = sphi 0, %s238
      %s253 = sphi 0, %s239
      %s259 = sphi 0, %s261
      %s262 = sphi 0, %s259
      %s263 = sphi 0, %s262
      %s279 = sphi 0, %s263
      %s285 = sphi 0, %s287
      %s288 = sphi 0, %s285
      %s289 = sphi 0, %s288
      %s305 = sphi 0, %s289
    $region4: #{tpu_custom_call.1} parent=1 // loop_header_branch
      %27 = sbr.rel (%p25) target = $region8
    $region5: #{tpu_custom_call.1} parent=1 // loop_body
      %s29 = ssub.s32 %s24, 1
      %s30 = ssub.s32 %s24, 2
      %s31 = sadd.s32 %s24, 1
      %s32 = ssub.s32 %s24, %s31
      %p33 = scmp.eq.s32.totalorder %s32, 0
      %s35 = sadd.s32 %s34, 1
      %s36 = scalar_select %p33, %s34, %s35
      %p39 = pneg %p33
      %p40 = scmp.eq.s32.totalorder %s24, 1
      %p41 = por %p39, %p40
      %p42 = scmp.ne.s32.totalorder %s34, %s37
      %p43 = scmp.eq.s32.totalorder %s24, 0
      %p44 = por %p42, %p43
      %p45 = scmp.ne.s32.totalorder %s34, %s37
      %p46 = scmp.eq.s32.totalorder %s29, 1
      %p47 = por %p45, %p46
      %p48 = scmp.ne.s32.totalorder %s37, %s38
      %p49 = scmp.eq.s32.totalorder %s29, 0
      %p50 = por %p48, %p49
      %p51 = scmp.ne.s32.totalorder %s37, %s38
      %p52 = scmp.eq.s32.totalorder %s30, 1
      %p53 = por %p51, %p52
      %p55 = scmp.ne.s32.totalorder %s38, %s54
      %p56 = scmp.eq.s32.totalorder %s30, 0
      %p57 = por %p55, %p56
      %s58 = ssub.s32 %s24, %s31
      %p59 = scmp.eq.s32.totalorder %s58, 0
      %s61 = sadd.s32 %s60, 1
      %s62 = scalar_select %p59, %s60, %s61
      %p65 = pneg %p59
      %p66 = scmp.eq.s32.totalorder %s24, 1
      %p67 = por %p65, %p66
      %p68 = scmp.ne.s32.totalorder %s60, %s63
      %p69 = scmp.eq.s32.totalorder %s24, 0
      %p70 = por %p68, %p69
      %p71 = scmp.ne.s32.totalorder %s60, %s63
      %p72 = scmp.eq.s32.totalorder %s29, 1
      %p73 = por %p71, %p72
      %p74 = scmp.ne.s32.totalorder %s63, %s64
      %p75 = scmp.eq.s32.totalorder %s29, 0
      %p76 = por %p74, %p75
      %p77 = scmp.ne.s32.totalorder %s63, %s64
      %p78 = scmp.eq.s32.totalorder %s30, 1
      %p79 = por %p77, %p78
      %p81 = scmp.ne.s32.totalorder %s64, %s80
      %p82 = scmp.eq.s32.totalorder %s30, 0
      %p83 = por %p81, %p82
      %s84 = ssub.s32 %s24, %s31
      %p85 = scmp.eq.s32.totalorder %s84, 0
      %s87 = sadd.s32 %s86, 1
      %s88 = scalar_select %p85, %s86, %s87
      %p91 = pneg %p85
      %p92 = scmp.eq.s32.totalorder %s24, 1
      %p93 = por %p91, %p92
      %p94 = scmp.ne.s32.totalorder %s86, %s89
      %p95 = scmp.eq.s32.totalorder %s24, 0
      %p96 = por %p94, %p95
      %p97 = scmp.ne.s32.totalorder %s86, %s89
      %p98 = scmp.eq.s32.totalorder %s29, 1
      %p99 = por %p97, %p98
      %p100 = scmp.ne.s32.totalorder %s89, %s90
      %p101 = scmp.eq.s32.totalorder %s29, 0
      %p102 = por %p100, %p101
      %p103 = scmp.ne.s32.totalorder %s89, %s90
      %p104 = scmp.eq.s32.totalorder %s30, 1
      %p105 = por %p103, %p104
      %p107 = scmp.ne.s32.totalorder %s90, %s106
      %p108 = scmp.eq.s32.totalorder %s30, 0
      %p109 = por %p107, %p108
      %s111 = sadd.s32 %s110, 1
      %p114 = scmp.eq.s32.totalorder %s24, 1
      %p115 = scmp.ne.s32.totalorder %s110, %s112
      %p116 = scmp.eq.s32.totalorder %s24, 0
      %p117 = por %p115, %p116
      %p118 = scmp.ne.s32.totalorder %s110, %s112
      %p119 = scmp.eq.s32.totalorder %s29, 1
      %p120 = por %p118, %p119
      %p121 = scmp.ne.s32.totalorder %s112, %s113
      %p122 = scmp.eq.s32.totalorder %s29, 0
      %p123 = por %p121, %p122
      %p124 = scmp.ne.s32.totalorder %s112, %s113
      %p125 = scmp.eq.s32.totalorder %s30, 1
      %p126 = por %p124, %p125
      %p128 = scmp.ne.s32.totalorder %s113, %s127
      %p129 = scmp.eq.s32.totalorder %s30, 0
      %p130 = por %p128, %p129
      %s132 = sadd.s32 %s131, 1
      %p135 = scmp.eq.s32.totalorder %s24, 1
      %p136 = scmp.ne.s32.totalorder %s131, %s133
      %p137 = scmp.eq.s32.totalorder %s24, 0
      %p138 = por %p136, %p137
      %p139 = scmp.ne.s32.totalorder %s131, %s133
      %p140 = scmp.eq.s32.totalorder %s29, 1
      %p141 = por %p139, %p140
      %p142 = scmp.ne.s32.totalorder %s133, %s134
      %p143 = scmp.eq.s32.totalorder %s29, 0
      %p144 = por %p142, %p143
      %p145 = scmp.ne.s32.totalorder %s133, %s134
      %p146 = scmp.eq.s32.totalorder %s30, 1
      %p147 = por %p145, %p146
      %p149 = scmp.ne.s32.totalorder %s134, %s148
      %p150 = scmp.eq.s32.totalorder %s30, 0
      %p151 = por %p149, %p150
      %s153 = sadd.s32 %s152, 1
      %p156 = scmp.eq.s32.totalorder %s24, 1
      %p157 = scmp.ne.s32.totalorder %s152, %s154
      %p158 = scmp.eq.s32.totalorder %s24, 0
      %p159 = por %p157, %p158
      %p160 = scmp.ne.s32.totalorder %s152, %s154
      %p161 = scmp.eq.s32.totalorder %s29, 1
      %p162 = por %p160, %p161
      %p163 = scmp.ne.s32.totalorder %s154, %s155
      %p164 = scmp.eq.s32.totalorder %s29, 0
      %p165 = por %p163, %p164
      %p166 = scmp.ne.s32.totalorder %s154, %s155
      %p167 = scmp.eq.s32.totalorder %s30, 1
      %p168 = por %p166, %p167
      %p170 = scmp.ne.s32.totalorder %s155, %s169
      %p171 = scmp.eq.s32.totalorder %s30, 0
      %p172 = por %p170, %p171
      %s174 = sadd.s32 %s173, 1
      %p177 = scmp.eq.s32.totalorder %s24, 1
      %p178 = scmp.ne.s32.totalorder %s173, %s175
      %p179 = scmp.eq.s32.totalorder %s24, 0
      %p180 = por %p178, %p179
      %p181 = scmp.ne.s32.totalorder %s173, %s175
      %p182 = scmp.eq.s32.totalorder %s29, 1
      %p183 = por %p181, %p182
      %p184 = scmp.ne.s32.totalorder %s175, %s176
      %p185 = scmp.eq.s32.totalorder %s29, 0
      %p186 = por %p184, %p185
      %p187 = scmp.ne.s32.totalorder %s175, %s176
      %p188 = scmp.eq.s32.totalorder %s30, 1
      %p189 = por %p187, %p188
      %p191 = scmp.ne.s32.totalorder %s176, %s190
      %p192 = scmp.eq.s32.totalorder %s30, 0
      %p193 = por %p191, %p192
      %s195 = sadd.s32 %s194, 1
      %p198 = scmp.eq.s32.totalorder %s24, 1
      %p199 = scmp.ne.s32.totalorder %s194, %s196
      %p200 = scmp.eq.s32.totalorder %s24, 0
      %p201 = por %p199, %p200
      %p202 = scmp.ne.s32.totalorder %s194, %s196
      %p203 = scmp.eq.s32.totalorder %s29, 1
      %p204 = por %p202, %p203
      %p205 = scmp.ne.s32.totalorder %s196, %s197
      %p206 = scmp.eq.s32.totalorder %s29, 0
      %p207 = por %p205, %p206
      %p208 = scmp.ne.s32.totalorder %s196, %s197
      %p209 = scmp.eq.s32.totalorder %s30, 1
      %p210 = por %p208, %p209
      %p212 = scmp.ne.s32.totalorder %s197, %s211
      %p213 = scmp.eq.s32.totalorder %s30, 0
      %p214 = por %p212, %p213
      %s216 = sadd.s32 %s215, 1
      %p219 = scmp.eq.s32.totalorder %s24, 1
      %p220 = scmp.ne.s32.totalorder %s215, %s217
      %p221 = scmp.eq.s32.totalorder %s24, 0
      %p222 = por %p220, %p221
      %p223 = scmp.ne.s32.totalorder %s215, %s217
      %p224 = scmp.eq.s32.totalorder %s29, 1
      %p225 = por %p223, %p224
      %p226 = scmp.ne.s32.totalorder %s217, %s218
      %p227 = scmp.eq.s32.totalorder %s29, 0
      %p228 = por %p226, %p227
      %p229 = scmp.ne.s32.totalorder %s217, %s218
      %p230 = scmp.eq.s32.totalorder %s30, 1
      %p231 = por %p229, %p230
      %p233 = scmp.ne.s32.totalorder %s218, %s232
      %p234 = scmp.eq.s32.totalorder %s30, 0
      %p235 = por %p233, %p234
      %s237 = sadd.s32 %s236, 1
      %p240 = scmp.eq.s32.totalorder %s24, 1
      %p241 = scmp.ne.s32.totalorder %s236, %s238
      %p242 = scmp.eq.s32.totalorder %s24, 0
      %p243 = por %p241, %p242
      %p244 = scmp.ne.s32.totalorder %s236, %s238
      %p245 = scmp.eq.s32.totalorder %s29, 1
      %p246 = por %p244, %p245
      %p247 = scmp.ne.s32.totalorder %s238, %s239
      %p248 = scmp.eq.s32.totalorder %s29, 0
      %p249 = por %p247, %p248
      %p250 = scmp.ne.s32.totalorder %s238, %s239
      %p251 = scmp.eq.s32.totalorder %s30, 1
      %p252 = por %p250, %p251
      %p254 = scmp.ne.s32.totalorder %s239, %s253
      %p255 = scmp.eq.s32.totalorder %s30, 0
      %p256 = por %p254, %p255
      %s257 = ssub.s32 %s24, %s31
      %p258 = scmp.eq.s32.totalorder %s257, 0
      %s260 = sadd.s32 %s259, 1
      %s261 = scalar_select %p258, %s259, %s260
      %p264 = pneg %p258
      %p265 = scmp.eq.s32.totalorder %s24, 1
      %p266 = por %p264, %p265
      %p267 = scmp.ne.s32.totalorder %s259, %s262
      %p268 = scmp.eq.s32.totalorder %s24, 0
      %p269 = por %p267, %p268
      %p270 = scmp.ne.s32.totalorder %s259, %s262
      %p271 = scmp.eq.s32.totalorder %s29, 1
      %p272 = por %p270, %p271
      %p273 = scmp.ne.s32.totalorder %s262, %s263
      %p274 = scmp.eq.s32.totalorder %s29, 0
      %p275 = por %p273, %p274
      %p276 = scmp.ne.s32.totalorder %s262, %s263
      %p277 = scmp.eq.s32.totalorder %s30, 1
      %p278 = por %p276, %p277
      %p280 = scmp.ne.s32.totalorder %s263, %s279
      %p281 = scmp.eq.s32.totalorder %s30, 0
      %p282 = por %p280, %p281
      %s283 = ssub.s32 %s24, %s31
      %p284 = scmp.eq.s32.totalorder %s283, 0
      %s286 = sadd.s32 %s285, 1
      %s287 = scalar_select %p284, %s285, %s286
      %p290 = pneg %p284
      %p291 = scmp.eq.s32.totalorder %s24, 1
      %p292 = por %p290, %p291
      %p293 = scmp.ne.s32.totalorder %s285, %s288
      %p294 = scmp.eq.s32.totalorder %s24, 0
      %p295 = por %p293, %p294
      %p296 = scmp.ne.s32.totalorder %s285, %s288
      %p297 = scmp.eq.s32.totalorder %s29, 1
      %p298 = por %p296, %p297
      %p299 = scmp.ne.s32.totalorder %s288, %s289
      %p300 = scmp.eq.s32.totalorder %s29, 0
      %p301 = por %p299, %p300
      %p302 = scmp.ne.s32.totalorder %s288, %s289
      %p303 = scmp.eq.s32.totalorder %s30, 1
      %p304 = por %p302, %p303
      %p306 = scmp.ne.s32.totalorder %s289, %s305
      %p307 = scmp.eq.s32.totalorder %s30, 0
      %p308 = por %p306, %p307
      %p309 = scmp.le.s32.totalorder 1, %s24
      %p310 = scmp.lt.s32.totalorder %s24, 3
      %p311 = pnand %p309, %p310
      %p312 = pneg %p311
      // Predicated region
      $region9: #{tpu_custom_call.1} parent=5 // pred_check
        _
      $region10: #{tpu_custom_call.1} parent=5 // pred_check_branch
        %314 = sbr.rel (%p311) target = $region12
      $region11: #{tpu_custom_call.1} parent=5 // pred_region
        %s315 = ssub.s32 %s24, 1
        // Predicated region
        $region13: #{tpu_custom_call.1} parent=11 // pred_check
          %p316 = pneg %p123
        $region14: #{tpu_custom_call.1} parent=11 // pred_check_branch
          %318 = sbr.rel (%p316) target = $region16
        $region15: #{tpu_custom_call.1} parent=11 // pred_region
          _
        $region16: #{tpu_custom_call.1} parent=11 // pred_fallthru
          _
        // Predicated region
        $region17: #{tpu_custom_call.1} parent=11 // pred_check
          %p319 = pneg %p144
        $region18: #{tpu_custom_call.1} parent=11 // pred_check_branch
          %321 = sbr.rel (%p319) target = $region20
        $region19: #{tpu_custom_call.1} parent=11 // pred_region
          _
        $region20: #{tpu_custom_call.1} parent=11 // pred_fallthru
          _
        // Predicated region
        $region21: #{tpu_custom_call.1} parent=11 // pred_check
          %p322 = pneg %p165
        $region22: #{tpu_custom_call.1} parent=11 // pred_check_branch
          %324 = sbr.rel (%p322) target = $region24
        $region23: #{tpu_custom_call.1} parent=11 // pred_region
          _
        $region24: #{tpu_custom_call.1} parent=11 // pred_fallthru
          _
        // Predicated region
        $region25: #{tpu_custom_call.1} parent=11 // pred_check
          %p325 = pneg %p186
        $region26: #{tpu_custom_call.1} parent=11 // pred_check_branch
          %327 = sbr.rel (%p325) target = $region28
        $region27: #{tpu_custom_call.1} parent=11 // pred_region
          _
        $region28: #{tpu_custom_call.1} parent=11 // pred_fallthru
          _
        // Predicated region
        $region29: #{tpu_custom_call.1} parent=11 // pred_check
          %p328 = pneg %p207
        $region30: #{tpu_custom_call.1} parent=11 // pred_check_branch
          %330 = sbr.rel (%p328) target = $region32
        $region31: #{tpu_custom_call.1} parent=11 // pred_region
          _
        $region32: #{tpu_custom_call.1} parent=11 // pred_fallthru
          _
        // Predicated region
        $region33: #{tpu_custom_call.1} parent=11 // pred_check
          %p331 = pneg %p228
        $region34: #{tpu_custom_call.1} parent=11 // pred_check_branch
          %333 = sbr.rel (%p331) target = $region36
        $region35: #{tpu_custom_call.1} parent=11 // pred_region
          _
        $region36: #{tpu_custom_call.1} parent=11 // pred_fallthru
          _
        // Predicated region
        $region37: #{tpu_custom_call.1} parent=11 // pred_check
          %p334 = pneg %p249
        $region38: #{tpu_custom_call.1} parent=11 // pred_check_branch
          %336 = sbr.rel (%p334) target = $region40
        $region39: #{tpu_custom_call.1} parent=11 // pred_region
          _
        $region40: #{tpu_custom_call.1} parent=11 // pred_fallthru
          _
      $region12: #{tpu_custom_call.1} parent=5 // pred_fallthru
        _
      %p337 = scmp.lt.s32.totalorder %s24, 2
      // Predicated region
      $region41: #{tpu_custom_call.1} parent=5 // pred_check
        %p338 = pneg %p337
      $region42: #{tpu_custom_call.1} parent=5 // pred_check_branch
        %340 = sbr.rel (%p338) target = $region44
      $region43: #{tpu_custom_call.1} parent=5 // pred_region
        // Predicated region
        $region45: #{tpu_custom_call.1} parent=43 // pred_check
          %p341 = pneg %p44
        $region46: #{tpu_custom_call.1} parent=43 // pred_check_branch
          %343 = sbr.rel (%p341) target = $region48
        $region47: #{tpu_custom_call.1} parent=43 // pred_region
          %p344 = scmp.lt.s32.totalorder %s24, 1
          %s345 = scalar_select %p344, %s24, 1
          %s346 = smul.addr %s345, 4
          %s347 = smul.addr %s346, 8
          %s348 = scalar_lea.vmem %s0, %s347
        $region48: #{tpu_custom_call.1} parent=43 // pred_fallthru
          _
        // Predicated region
        $region49: #{tpu_custom_call.1} parent=43 // pred_check
          %p349 = pneg %p70
        $region50: #{tpu_custom_call.1} parent=43 // pred_check_branch
          %351 = sbr.rel (%p349) target = $region52
        $region51: #{tpu_custom_call.1} parent=43 // pred_region
          %p352 = scmp.lt.s32.totalorder %s24, 1
          %s353 = scalar_select %p352, %s24, 1
          %s354 = smul.addr %s353, 4
          %s355 = smul.addr %s354, 4
          %s356 = scalar_lea.vmem %s1, %s355
        $region52: #{tpu_custom_call.1} parent=43 // pred_fallthru
          _
        // Predicated region
        $region53: #{tpu_custom_call.1} parent=43 // pred_check
          %p357 = pneg %p96
        $region54: #{tpu_custom_call.1} parent=43 // pred_check_branch
          %359 = sbr.rel (%p357) target = $region56
        $region55: #{tpu_custom_call.1} parent=43 // pred_region
          %p360 = scmp.lt.s32.totalorder %s24, 1
          %s361 = scalar_select %p360, %s24, 1
          %s362 = smul.addr %s361, 4
          %s363 = smul.addr %s362, 8
          %s364 = scalar_lea.vmem %s2, %s363
        $region56: #{tpu_custom_call.1} parent=43 // pred_fallthru
          _
      $region44: #{tpu_custom_call.1} parent=5 // pred_fallthru
        _
      %p365 = scmp.le.s32.totalorder 1, %s24
      %p366 = scmp.lt.s32.totalorder %s24, 3
      %p367 = pnand %p365, %p366
      %p368 = pneg %p367
      // Predicated region
      $region57: #{tpu_custom_call.1} parent=5 // pred_check
        _
      $region58: #{tpu_custom_call.1} parent=5 // pred_check_branch
        %370 = sbr.rel (%p367) target = $region60
      $region59: #{tpu_custom_call.1} parent=5 // pred_region
        %s371 = ssub.s32 %s24, 1
        %p372 = scmp.lt.s32.totalorder %s29, 1
        %s373 = scalar_select %p372, %s29, 1
        %s374 = smul.addr %s373, 4
        %s375 = smul.addr %s374, 8
        %s376 = scalar_lea.vmem %s0, %s375
        %p377 = pneg %p50
        %p378 = pneg %p47
        %p379 = scmp.lt.s32.totalorder %s29, 1
        %s380 = scalar_select %p379, %s29, 1
        %s381 = smul.addr %s380, 4
        %s382 = smul.addr %s381, 4
        %s383 = scalar_lea.vmem %s1, %s382
        %p384 = pneg %p76
        %p385 = pneg %p73
        %p386 = scmp.lt.s32.totalorder %s29, 1
        %s387 = scalar_select %p386, %s29, 1
        %s388 = smul.addr %s387, 4
        %s389 = smul.addr %s388, 8
        %s390 = scalar_lea.vmem %s2, %s389
        %p391 = pneg %p102
        %p392 = pneg %p99
        %p393 = pneg %p123
        %p394 = pneg %p120
        %p395 = pneg %p144
        %p396 = pneg %p141
        %p397 = pneg %p165
        %p398 = pneg %p162
        %p399 = pneg %p186
        %p400 = pneg %p183
        %p401 = pneg %p207
        %p402 = pneg %p204
        %p403 = pneg %p228
        %p404 = pneg %p225
        %p405 = pneg %p249
        %p406 = pneg %p246
        %p407 = pneg %p275
        %p408 = pneg %p272
        %s409 = sand.u32 %s262, 1
        %s410 = scalar_lea.sflag [#allocation3], %s409
        %s411 = sand.u32 %s262, 1
        %s412 = smul.addr %s411, 32
        %s413 = scalar_lea.vmem [#allocation2], %s412
        %p414 = pneg %p301
        %p415 = pneg %p298
        %s416 = sand.u32 %s288, 1
        %s417 = scalar_lea.sflag [#allocation5], %s416
        %s418 = sand.u32 %s288, 1
        %s419 = smul.addr %s418, 32
        %s420 = scalar_lea.vmem [#allocation4], %s419
        %p421 = scmp.lt.s32.totalorder %s29, 1
        %s422 = scalar_select %p421, %s29, 1
        %s423 = smul.addr %s422, 4
        %s424 = smul.addr %s423, 8
        %s425 = scalar_lea.vmem %s0, %s424
        %p426 = scmp.lt.s32.totalorder %s29, 1
        %s427 = scalar_select %p426, %s29, 1
        %s428 = smul.addr %s427, 4
        %s429 = smul.addr %s428, 4
        %s430 = scalar_lea.vmem %s1, %s429
        %p431 = scmp.lt.s32.totalorder %s29, 1
        %s432 = scalar_select %p431, %s29, 1
        %s433 = smul.addr %s432, 4
        %s434 = smul.addr %s433, 8
        %s435 = scalar_lea.vmem %s2, %s434
        %v437 = vld [vmem:[%s425] sm:$0xff]
        %v438 = vld [vmem:[%s425 + $0x8] sm:$0xff]
        %v439 = vld [vmem:[%s425 + $0x10] sm:$0xff]
        %v440 = vld [vmem:[%s425 + $0x18] sm:$0xff]
        %v441 = vld [vmem:[%s4] sm:$0x1]
        %443 = vset.pattern.permute.xlu0 0
        %444 = vperm.xlu0 %443, %v437
        %v445 = vpop.permute.xlu0 %444
        %448 = vset.pattern.permute.xlu0 0
        %449 = vperm.xlu0 %448, %v438
        %v450 = vpop.permute.xlu0 %449
        %453 = vset.pattern.permute.xlu0 0
        %454 = vperm.xlu0 %453, %v439
        %v455 = vpop.permute.xlu0 %454
        %458 = vset.pattern.permute.xlu0 0
        %459 = vperm.xlu0 %458, %v440
        %v460 = vpop.permute.xlu0 %459
        %v462 = vperm.slane %v441, 0
        %v463 = vmul.f32 %v445, %v462
        %v464 = vmul.f32 %v450, %v462
        %v465 = vmul.f32 %v455, %v462
        %v466 = vmul.f32 %v460, %v462
        %v467 = vld [vmem:[%s5] sm:$0x1]
        %v469 = vperm.slane %v467, 0
        %v471 = vadd.f32 %v463, %v469
        %v472 = vadd.f32 %v464, %v469
        %v473 = vadd.f32 %v465, %v469
        %v474 = vadd.f32 %v466, %v469
        %v475 = vld [vmem:[%s4 + $0x1] sm:$0x1]
        %476 = vset.pattern.permute.xlu0 1
        %477 = vperm.xlu0 %476, %v437
        %v478 = vpop.permute.xlu0 %477
        %480 = vset.pattern.permute.xlu0 1
        %481 = vperm.xlu0 %480, %v438
        %v482 = vpop.permute.xlu0 %481
        %484 = vset.pattern.permute.xlu0 1
        %485 = vperm.xlu0 %484, %v439
        %v486 = vpop.permute.xlu0 %485
        %488 = vset.pattern.permute.xlu0 1
        %489 = vperm.xlu0 %488, %v440
        %v490 = vpop.permute.xlu0 %489
        %v492 = vperm.slane %v475, 0
        %v493 = vmul.f32 %v478, %v492
        %v494 = vmul.f32 %v482, %v492
        %v495 = vmul.f32 %v486, %v492
        %v496 = vmul.f32 %v490, %v492
        %v497 = vadd.f32 %v471, %v493
        %v498 = vadd.f32 %v472, %v494
        %v499 = vadd.f32 %v473, %v495
        %v500 = vadd.f32 %v474, %v496
        %v501 = vld [vmem:[%s4 + $0x2] sm:$0x1]
        %502 = vset.pattern.permute.xlu0 2
        %503 = vperm.xlu0 %502, %v437
        %v504 = vpop.permute.xlu0 %503
        %506 = vset.pattern.permute.xlu0 2
        %507 = vperm.xlu0 %506, %v438
        %v508 = vpop.permute.xlu0 %507
        %510 = vset.pattern.permute.xlu0 2
        %511 = vperm.xlu0 %510, %v439
        %v512 = vpop.permute.xlu0 %511
        %514 = vset.pattern.permute.xlu0 2
        %515 = vperm.xlu0 %514, %v440
        %v516 = vpop.permute.xlu0 %515
        %v518 = vperm.slane %v501, 0
        %v519 = vmul.f32 %v504, %v518
        %v520 = vmul.f32 %v508, %v518
        %v521 = vmul.f32 %v512, %v518
        %v522 = vmul.f32 %v516, %v518
        %v523 = vadd.f32 %v497, %v519
        %v524 = vadd.f32 %v498, %v520
        %v525 = vadd.f32 %v499, %v521
        %v526 = vadd.f32 %v500, %v522
        %v527 = vld [vmem:[%s4 + $0x3] sm:$0x1]
        %528 = vset.pattern.permute.xlu0 3
        %529 = vperm.xlu0 %528, %v437
        %v530 = vpop.permute.xlu0 %529
        %532 = vset.pattern.permute.xlu0 3
        %533 = vperm.xlu0 %532, %v438
        %v534 = vpop.permute.xlu0 %533
        %536 = vset.pattern.permute.xlu0 3
        %537 = vperm.xlu0 %536, %v439
        %v538 = vpop.permute.xlu0 %537
        %540 = vset.pattern.permute.xlu0 3
        %541 = vperm.xlu0 %540, %v440
        %v542 = vpop.permute.xlu0 %541
        %v544 = vperm.slane %v527, 0
        %v545 = vmul.f32 %v530, %v544
        %v546 = vmul.f32 %v534, %v544
        %v547 = vmul.f32 %v538, %v544
        %v548 = vmul.f32 %v542, %v544
        %v549 = vadd.f32 %v523, %v545
        %v550 = vadd.f32 %v524, %v546
        %v551 = vadd.f32 %v525, %v547
        %v552 = vadd.f32 %v526, %v548
        %v553 = vld [vmem:[%s4 + $0x4] sm:$0x1]
        %554 = vset.pattern.permute.xlu0 4
        %555 = vperm.xlu0 %554, %v437
        %v556 = vpop.permute.xlu0 %555
        %558 = vset.pattern.permute.xlu0 4
        %559 = vperm.xlu0 %558, %v438
        %v560 = vpop.permute.xlu0 %559
        %562 = vset.pattern.permute.xlu0 4
        %563 = vperm.xlu0 %562, %v439
        %v564 = vpop.permute.xlu0 %563
        %566 = vset.pattern.permute.xlu0 4
        %567 = vperm.xlu0 %566, %v440
        %v568 = vpop.permute.xlu0 %567
        %v570 = vperm.slane %v553, 0
        %v571 = vmul.f32 %v556, %v570
        %v572 = vmul.f32 %v560, %v570
        %v573 = vmul.f32 %v564, %v570
        %v574 = vmul.f32 %v568, %v570
        %v575 = vadd.f32 %v549, %v571
        %v576 = vadd.f32 %v550, %v572
        %v577 = vadd.f32 %v551, %v573
        %v578 = vadd.f32 %v552, %v574
        %v579 = vmax.f32 %v575, 0.0
        %v580 = vmax.f32 %v576, 0.0
        %v581 = vmax.f32 %v577, 0.0
        %v582 = vmax.f32 %v578, 0.0
        %v583 = vpack.c.bf16 %v580, %v579
        %v584 = vpack.c.bf16 %v582, %v581
        %v585 = vld [vmem:[%s6] sm:$0xf]
        %v586 = vld [vmem:[%s6 + $0x4] sm:$0xf]
        %v587 = vld [vmem:[%s6 + $0x8] sm:$0xf]
        %v588 = vld [vmem:[%s6 + $0xc] sm:$0xf]
        %v589 = vld [vmem:[%s7] sm:$0x1]
        %v591 = vperm.slane %v589, 0
        %v597 = vunpack.c.l.b16 %v585
        %v598 = vunpack.c.l.b16 %v586
        %v599 = vunpack.c.l.b16 %v587
        %v600 = vunpack.c.l.b16 %v588
        %v601 = vpack.c.b16 %v598, %v597
        %v602 = vpack.c.b16 %v600, %v599
        %vm605 = vcmask 261120
        %v607 = vsel %vm605, %v583, 0
        %v610 = vsel %vm605, %v584, 0
        %612 = vmatpush.bf16.msra.mxu0 0
        %613 = vmatpush.bf16.msra.mxu0 0
        %614 = vmatpush.bf16.msra.mxu0 0
        %615 = vmatpush.bf16.msra.mxu0 0
        %616 = vmatpush.bf16.msra.mxu0 0
        %617 = vmatpush.bf16.msra.mxu0 0
        %618 = vmatpush.bf16.msra.mxu0 %v602
        %619 = vmatpush.bf16.msra.mxu0 %v601
        %620 = vmatmul.bf16.gmra.mxu0 %v607
        %v621 = vpop.f32.mrf.mxu0
        %v622 = vadd.f32 %v591, %v621
        %v623 = vpop.f32.mrf.mxu0
        %v624 = vadd.f32 %v591, %v623
        %625 = vmatmul.bf16.gmra.mxu0 %v610
        %v626 = vpop.f32.mrf.mxu0
        %v627 = vadd.f32 %v591, %v626
        %v628 = vpop.f32.mrf.mxu0
        %v629 = vadd.f32 %v591, %v628
        %630 = vdwg.mxu0
        %v631 = vld [vmem:[%s430] sm:$0xf]
        %v632 = vld [vmem:[%s430 + $0x4] sm:$0xf]
        %v633 = vld [vmem:[%s430 + $0x8] sm:$0xf]
        %v634 = vld [vmem:[%s430 + $0xc] sm:$0xf]
        %v635 = vld [vmem:[%s8] sm:$0xf]
        %v636 = vld [vmem:[%s8 + $0x4] sm:$0xf]
        %v637 = vld [vmem:[%s8 + $0x8] sm:$0xf]
        %v638 = vld [vmem:[%s8 + $0xc] sm:$0xf]
        %v639 = vld [vmem:[%s8 + $0x10] sm:$0xf]
        %v640 = vld [vmem:[%s8 + $0x14] sm:$0xf]
        %v641 = vld [vmem:[%s8 + $0x18] sm:$0xf]
        %v642 = vld [vmem:[%s8 + $0x1c] sm:$0xf]
        %v643 = vld [vmem:[%s9] sm:$0x1]
        %v645 = vperm.slane %v643, 0
        %v651 = vunpack.c.l.b16 %v631
        %v652 = vunpack.c.l.b16 %v632
        %v653 = vunpack.c.l.b16 %v633
        %v654 = vunpack.c.l.b16 %v634
        %v655 = vpack.c.b16 %v652, %v651
        %v656 = vpack.c.b16 %v654, %v653
        %v665 = vunpack.c.l.b16 %v635
        %v666 = vunpack.c.l.b16 %v636
        %v667 = vunpack.c.l.b16 %v637
        %v668 = vunpack.c.l.b16 %v638
        %v669 = vunpack.c.l.b16 %v639
        %v670 = vunpack.c.l.b16 %v640
        %v671 = vunpack.c.l.b16 %v641
        %v672 = vunpack.c.l.b16 %v642
        %v673 = vpack.c.b16 %v666, %v665
        %v674 = vpack.c.b16 %v668, %v667
        %v675 = vpack.c.b16 %v670, %v669
        %v676 = vpack.c.b16 %v672, %v671
        %vm681 = vcmask 523264
        %v683 = vsel %vm681, %v655, 0
        %v686 = vsel %vm681, %v656, 0
        %688 = vmatpush.bf16.msra.mxu0 0
        %689 = vmatpush.bf16.msra.mxu0 0
        %690 = vmatpush.bf16.msra.mxu0 0
        %691 = vmatpush.bf16.msra.mxu0 0
        %692 = vmatpush.bf16.msra.mxu0 %v676
        %693 = vmatpush.bf16.msra.mxu0 %v675
        %694 = vmatpush.bf16.msra.mxu0 %v674
        %695 = vmatpush.bf16.msra.mxu0 %v673
        %696 = vmatmul.bf16.gmra.mxu0 %v683
        %v697 = vpop.f32.mrf.mxu0
        %v698 = vadd.f32 %v645, %v697
        %v699 = vpop.f32.mrf.mxu0
        %v700 = vadd.f32 %v645, %v699
        %701 = vmatmul.bf16.gmra.mxu0 %v686
        %v702 = vpop.f32.mrf.mxu0
        %v703 = vadd.f32 %v645, %v702
        %v704 = vpop.f32.mrf.mxu0
        %v705 = vadd.f32 %v645, %v704
        %706 = vdwg.mxu0
        %v707 = vadd.f32 %v622, %v698
        %v708 = vadd.f32 %v624, %v700
        %v709 = vadd.f32 %v627, %v703
        %v710 = vadd.f32 %v629, %v705
        %v711 = vld [vmem:[%s3] sm:$0xff]
        %v712 = vld [vmem:[%s3 + $0x8] sm:$0xff]
        %v713 = vld [vmem:[%s3 + $0x10] sm:$0xff]
        %v714 = vld [vmem:[%s3 + $0x18] sm:$0xff]
        %v715 = vadd.f32 %v707, %v711
        %v716 = vadd.f32 %v708, %v712
        %v717 = vadd.f32 %v709, %v713
        %v718 = vadd.f32 %v710, %v714
        %v719 = vld [vmem:[%s435] sm:$0xff]
        %v720 = vld [vmem:[%s435 + $0x8] sm:$0xff]
        %v721 = vld [vmem:[%s435 + $0x10] sm:$0xff]
        %v722 = vld [vmem:[%s435 + $0x18] sm:$0xff]
        %724 = vset.pattern.permute.xlu0 0
        %725 = vperm.xlu0 %724, %v719
        %v726 = vpop.permute.xlu0 %725
        %729 = vset.pattern.permute.xlu0 0
        %730 = vperm.xlu0 %729, %v720
        %v731 = vpop.permute.xlu0 %730
        %734 = vset.pattern.permute.xlu0 0
        %735 = vperm.xlu0 %734, %v721
        %v736 = vpop.permute.xlu0 %735
        %739 = vset.pattern.permute.xlu0 0
        %740 = vperm.xlu0 %739, %v722
        %v741 = vpop.permute.xlu0 %740
        %v743 = vmul.f32 %v715, %v726
        %v744 = vmul.f32 %v716, %v731
        %v745 = vmul.f32 %v717, %v736
        %v746 = vmul.f32 %v718, %v741
        %747 = vst.msk [vmem:[%s413] sm:$0xff] %vm605, %v743
        %748 = vst.msk [vmem:[%s413 + $0x8] sm:$0xff] %vm605, %v744
        %749 = vst.msk [vmem:[%s413 + $0x10] sm:$0xff] %vm605, %v745
        %750 = vst.msk [vmem:[%s413 + $0x18] sm:$0xff] %vm605, %v746
        %751 = vst.msk [vmem:[%s420] sm:$0xff] %vm605, %v698
        %752 = vst.msk [vmem:[%s420 + $0x8] sm:$0xff] %vm605, %v700
        %753 = vst.msk [vmem:[%s420 + $0x10] sm:$0xff] %vm605, %v703
        %754 = vst.msk [vmem:[%s420 + $0x18] sm:$0xff] %vm605, %v705
        %s755 = sand.u32 %s262, 1
        %s756 = scalar_lea.sflag [#allocation3], %s755
        %s757 = sand.u32 %s262, 1
        %s758 = smul.addr %s757, 32
        %s759 = scalar_lea.vmem [#allocation2], %s758
        %s760 = sand.u32 %s288, 1
        %s761 = scalar_lea.sflag [#allocation5], %s760
        %s762 = sand.u32 %s288, 1
        %s763 = smul.addr %s762, 32
        %s764 = scalar_lea.vmem [#allocation4], %s763
        // Predicated region
        $region61: #{tpu_custom_call.1} parent=59 // pred_check
          %p765 = pneg %p272
        $region62: #{tpu_custom_call.1} parent=59 // pred_check_branch
          %767 = sbr.rel (%p765) target = $region64
        $region63: #{tpu_custom_call.1} parent=59 // pred_region
          %769 = vsyncadd %s756, 0
          %s770 = smul.addr %s29, 4
          %s771 = smul.addr %s770, 8
          %s772 = scalar_lea.hbm %s10, %s771
          %s773 = sshll.u32 %s759, 4
          %s774 = int_to_ptr.vmem [resolvable:$true] %s773
          %s775 = sshll.u32 %s772, 4
          %s776 = int_to_ptr.hbm [resolvable:$true] %s775
          %781 = dma.vmem_to_hbm [thread:$0]  %s774, 512, %s776, %s756, 128, 128, 8
        $region64: #{tpu_custom_call.1} parent=59 // pred_fallthru
          _
        // Predicated region
        $region65: #{tpu_custom_call.1} parent=59 // pred_check
          %p782 = pneg %p298
        $region66: #{tpu_custom_call.1} parent=59 // pred_check_branch
          %784 = sbr.rel (%p782) target = $region68
        $region67: #{tpu_custom_call.1} parent=59 // pred_region
          %786 = vsyncadd %s761, 0
          %s787 = smul.addr %s29, 4
          %s788 = smul.addr %s787, 8
          %s789 = scalar_lea.hbm %s11, %s788
          %s790 = sshll.u32 %s764, 4
          %s791 = int_to_ptr.vmem [resolvable:$true] %s790
          %s792 = sshll.u32 %s789, 4
          %s793 = int_to_ptr.hbm [resolvable:$true] %s792
          %798 = dma.vmem_to_hbm [thread:$0]  %s791, 512, %s793, %s761, 128, 128, 8
        $region68: #{tpu_custom_call.1} parent=59 // pred_fallthru
          _
      $region60: #{tpu_custom_call.1} parent=5 // pred_fallthru
        _
      %p799 = scmp.le.s32.totalorder 2, %s24
      // Predicated region
      $region69: #{tpu_custom_call.1} parent=5 // pred_check
        %p800 = pneg %p799
      $region70: #{tpu_custom_call.1} parent=5 // pred_check_branch
        %802 = sbr.rel (%p800) target = $region72
      $region71: #{tpu_custom_call.1} parent=5 // pred_region
        %s803 = ssub.s32 %s24, 2
        // Predicated region
        $region73: #{tpu_custom_call.1} parent=71 // pred_check
          %p804 = pneg %p278
        $region74: #{tpu_custom_call.1} parent=71 // pred_check_branch
          %806 = sbr.rel (%p804) target = $region76
        $region75: #{tpu_custom_call.1} parent=71 // pred_region
          %s807 = sand.u32 %s263, 1
          %s808 = scalar_lea.sflag [#allocation3], %s807
          %s809 = sand.u32 %s263, 1
          %s810 = smul.addr %s809, 32
          %s811 = scalar_lea.vmem [#allocation2], %s810
          %813 = dma.done %s808, 512
        $region76: #{tpu_custom_call.1} parent=71 // pred_fallthru
          _
        // Predicated region
        $region77: #{tpu_custom_call.1} parent=71 // pred_check
          %p814 = pneg %p304
        $region78: #{tpu_custom_call.1} parent=71 // pred_check_branch
          %816 = sbr.rel (%p814) target = $region80
        $region79: #{tpu_custom_call.1} parent=71 // pred_region
          %s817 = sand.u32 %s289, 1
          %s818 = scalar_lea.sflag [#allocation5], %s817
          %s819 = sand.u32 %s289, 1
          %s820 = smul.addr %s819, 32
          %s821 = scalar_lea.vmem [#allocation4], %s820
          %823 = dma.done %s818, 512
        $region80: #{tpu_custom_call.1} parent=71 // pred_fallthru
          _
      $region72: #{tpu_custom_call.1} parent=5 // pred_fallthru
        _
    $region6: #{tpu_custom_call.1} parent=1 // loop_footer
      %s28 = sadd.s32 1, %s24
    $region7: #{tpu_custom_call.1} parent=1 // loop_footer_branch
      %23 = sbr.rel target = $region3
    $region8: #{tpu_custom_call.1} parent=1 // loop_exit
      _
    %824 = vsyncpa [#allocation3], 1
    %s825 = scalar_lea.sflag [#allocation3], 1
    %826 = vsyncpa %s825, 1
    %827 = vsyncpa [#allocation5], 1
    %s828 = scalar_lea.sflag [#allocation5], 1
    %829 = vsyncpa %s828, 1

</llo_original>
